<compile_context>
chip_gen: v5e
topology: v5e:2x2
jax: 0.10.0
libtpu: 0.0.40
codegen_flags: <defaults>
</compile_context>

<pallas_src>
import jax
import jax.numpy as jnp
from jax.experimental import pallas as pl
from jax.experimental.pallas import tpu as pltpu


def _hw_kernel(x_ref, p_ref, o_ref):
    # x_ref: (1,1) f32 scalar in SMEM
    # p_ref: (2,6) f32 in VMEM
    #   row 0 = w_eff = -beta * (W^T @ C)
    #   row 1 = b_eff = -beta * (b @ C + offset)
    xv = x_ref[0, 0]
    w_eff = p_ref[pl.ds(0, 1), :]                  # (1, 6) ref-slice load
    b_eff = p_ref[pl.ds(1, 1), :]                  # (1, 6) ref-slice load
    E = xv * w_eff + b_eff                         # (1, 6) single VPU FMA
    # numerically-stable softmax over the 6 valid lanes (exact division)
    m = jnp.max(E, axis=-1, keepdims=True)
    e = jnp.exp(E - m)
    denom = jnp.sum(e, axis=-1, keepdims=True)
    o_ref[...] = e / denom


def fold_params(weight, bias, coefficient, offset, beta):
    """Fold bmm / offset / (-beta) into effective linear params.

    Called once when the module parameters are set (NOT per forward call).
    Returns a (2, 6) float32 array: row 0 = w_eff, row 1 = b_eff.
    """
    w_t = jnp.reshape(weight, (6, 1)).T.astype(jnp.float32)    # (1, 6)
    b = jnp.reshape(bias, (1, 6)).astype(jnp.float32)
    c = jnp.reshape(coefficient, (6, 6)).astype(jnp.float32)
    off = jnp.reshape(offset, (1, 6)).astype(jnp.float32)
    beta = jnp.asarray(beta, jnp.float32)
    w_eff = -beta * (w_t @ c)                                   # (1, 6)
    b_eff = -beta * (b @ c + off)                               # (1, 6)
    return jnp.concatenate([w_eff, b_eff], axis=0)              # (2, 6)


@jax.jit
def hw_forward(x, params):
    """Hot path: x scalar-like (any 1-element array), params from fold_params."""
    x2 = jnp.reshape(x, (1, 1)).astype(jnp.float32)
    out = pl.pallas_call(
        _hw_kernel,
        out_shape=jax.ShapeDtypeStruct((1, 6), jnp.float32),
        in_specs=[
            pl.BlockSpec(memory_space=pltpu.MemorySpace.SMEM),  # x scalar
            pl.BlockSpec(memory_space=pltpu.MemorySpace.VMEM),  # packed params
        ],
        out_specs=pl.BlockSpec(memory_space=pltpu.MemorySpace.VMEM),
    )(x2, params)
    return jnp.reshape(out, (6,))


def _hw_reference(x, weight, bias, coefficient, offset, beta):
    # Pure-JAX reference mirroring the PyTorch module's forward.
    y = jnp.reshape(x, (1, 1)).astype(jnp.float32) @ weight.T.astype(jnp.float32) + bias
    E = (y @ coefficient.astype(jnp.float32)).reshape(6) + offset
    E = -E * beta
    return jax.nn.softmax(E, axis=0)


if __name__ == "__main__":
    key = jax.random.PRNGKey(0)
    k_w, k_b, k_x = jax.random.split(key, 3)

    # fc.weight: shape (6, 1), values uniform in [40, 60) (matches module init)
    weight = jax.random.uniform(k_w, (6, 1), jnp.float32, minval=40.0, maxval=60.0)
    # fc.bias: default nn.Linear init -> uniform(-1/sqrt(1), 1/sqrt(1))
    bias = jax.random.uniform(k_b, (6,), jnp.float32, minval=-1.0, maxval=1.0)

    coefficient = jnp.array(
        [[1, 0, 0, 1, 0, 0],
         [0, 1, 0, 0, 1, 0],
         [0, 0, 1, 0, 1, 0],
         [0, 0, 0, 0, 0, 1],
         [0, 0, 0, 1, 0, 1],
         [0, 0, 1, 0, 0, 0]], dtype=jnp.float32)
    offset = jnp.array([0, 0, 3, 3, 3, 3], dtype=jnp.float32)
    beta = 0.1

    # input: a single scalar value (module reshapes x to (1, 1))
    x = jax.random.uniform(k_x, (1,), jnp.float32, minval=0.0, maxval=1.0)

    # One-time parameter folding (outside the hot path).
    params = fold_params(weight, bias, coefficient, offset, beta)
    jax.block_until_ready(params)

    p = hw_forward(x, params)
    jax.block_until_ready(p)

    # sanity checks: shape, probabilities sum to ~1, and match pure-JAX reference
    assert p.shape == (6,)
    assert abs(float(jnp.sum(p)) - 1.0) < 1e-4
    p_ref = _hw_reference(x, weight, bias, coefficient, offset, beta)
    assert bool(jnp.allclose(p, p_ref, atol=1e-5, rtol=1e-4))
    print("KERNEL_OK")
</pallas_src>

<mosaic_0001>
module attributes {stable_mosaic.version = 11 : i64} {
  func.func @_hw_kernel(%arg0: memref<1x1xf32, #tpu.memory_space<smem>>, %arg1: memref<2x6xf32, #tpu.memory_space<vmem>>, %arg2: memref<1x6xf32, #tpu.memory_space<vmem>>) attributes {dimension_semantics = [], scalar_prefetch = 0 : i64, scratch_operands = 0 : i64, tpu.core_type = #tpu.core_type<tc>} {
    %c0 = arith.constant 0 : index
    %c0_0 = arith.constant 0 : index
    %0 = memref.load %arg0[%c0, %c0_0] : memref<1x1xf32, #tpu.memory_space<smem>>
    %c0_1 = arith.constant 0 : index
    %c0_2 = arith.constant 0 : index
    %1 = vector.load %arg1[%c0_1, %c0_2] : memref<2x6xf32, #tpu.memory_space<vmem>>, vector<1x6xf32>
    %c1 = arith.constant 1 : index
    %c0_3 = arith.constant 0 : index
    %2 = vector.load %arg1[%c1, %c0_3] : memref<2x6xf32, #tpu.memory_space<vmem>>, vector<1x6xf32>
    %3 = vector.broadcast %0 : f32 to vector<1x6xf32>
    %4 = arith.mulf %3, %1 : vector<1x6xf32>
    %5 = arith.addf %4, %2 : vector<1x6xf32>
    %cst = arith.constant dense<0xFF800000> : vector<1xf32>
    %6 = vector.multi_reduction <maximumf>, %5, %cst [1] : vector<1x6xf32> to vector<1xf32>
    %7 = vector.shape_cast %6 : vector<1xf32> to vector<1x1xf32>
    %8 = vector.broadcast %7 : vector<1x1xf32> to vector<1x6xf32>
    %9 = arith.subf %5, %8 : vector<1x6xf32>
    %10 = math.exp %9 : vector<1x6xf32>
    %cst_4 = arith.constant dense<0.000000e+00> : vector<1xf32>
    %11 = vector.multi_reduction <add>, %10, %cst_4 [1] : vector<1x6xf32> to vector<1xf32>
    %12 = vector.shape_cast %11 : vector<1xf32> to vector<1x1xf32>
    %13 = vector.broadcast %12 : vector<1x1xf32> to vector<1x6xf32>
    %14 = arith.divf %10, %13 : vector<1x6xf32>
    %c0_5 = arith.constant 0 : index
    %c0_6 = arith.constant 0 : index
    %15 = vector.load %arg2[%c0_5, %c0_6] : memref<1x6xf32, #tpu.memory_space<vmem>>, vector<1x6xf32>
    tpu.vector_store %arg2[%c0_5, %c0_6], %14 {strides = array<i32>} : memref<1x6xf32, #tpu.memory_space<vmem>>, vector<1x6xf32>,
    return
  }
}

</mosaic_0001>

<llo_original>
// kernel: hw_forward.1
$region0: #{hw_forward.1}
  #allocation0 [shape = 'u32[]', space=smem, size = 0x4, offset = 0x4, fixed_abs, tag = 'smem constant byte address 0x4 - core index']
  #allocation1 [shape = 'u32[72,128]{1,0:T(1,128)}', space=vmem, size = 0x9000, scoped, tag = 'internal scratch']
  #allocation2 [shape = 'f32[1,1]{1,0:T(1,128)S(6)}', space=smem, size = 0x200, scoped, tag = 'scoped memory for hw_forward.1']
  %s0 = inlined_call_operand.<no memory space> [shape: f32[1,1], index: 0, kind: input, shape index: {}]
  %s1 = inlined_call_operand.vmem [shape: f32[2,6], index: 1, kind: input, shape index: {}]
  %s2 = inlined_call_operand.hbm [shape: f32[1,6], index: 2, kind: output, shape index: {}]
  %s3 = sld [smem:[#allocation0]]
  $region18: #{hw_forward.1} parent=0
    _
  %s5 = ssub.s32 1, %s3
  %s6 = scalar_select 0, %s5, %s3
  %7 = sst [smem:[#allocation2]] %s0
  $region1: #{hw_forward.1} parent=0
    #allocation3 [shape = 'u8[512]{0}', space=vmem, size = 0x400, scoped, tag = 'output window, operand 0, single buffered']
    #allocation4 [shape = 's32[1]{0}', space=sflag, size = 0x4, scoped, tag = 'scoped memory for hw_forward.1']
    %8 = vsyncpa [#allocation4], 0
    // Predicated region
    $region2: #{hw_forward.1} parent=1 // pred_check
      _
    $region3: #{hw_forward.1} parent=1 // pred_check_branch
      %10 = sbr.rel (0) target = $region5
    $region4: #{hw_forward.1} parent=1 // pred_region
      _
    $region5: #{hw_forward.1} parent=1 // pred_fallthru
      _
    // Predicated region
    $region6: #{hw_forward.1} parent=1 // pred_check
      _
    $region7: #{hw_forward.1} parent=1 // pred_check_branch
      %12 = sbr.rel (0) target = $region9
    $region8: #{hw_forward.1} parent=1 // pred_region
      _
    $region9: #{hw_forward.1} parent=1 // pred_fallthru
      _
    %s13 = sld [smem:[#allocation2]]
    %v14 = vld [vmem:[%s1] sm:$0x1]
    %v15 = vld [vmem:[%s1 + $0x1] sm:$0x1]
    %v16 = vstv %s13
    %v17 = vmul.f32 %v16, %v14
    %v18 = vadd.f32 %v17, %v15
    %vm19 = vcmask 40960
    %v20 = vsel %vm19, %v18, -inf
    %21 = vmax.xlane.f32.xlu0 %v20
    %v22 = vpop.xlane.xlu0 %21
    %v23 = vsub.f32 %v18, %v22
    %v24 = vmul.f32 %v23, 1.442695
    %v25 = vpow.pop %v24
    %v26 = vsel %vm19, %v25, 0.0
    %27 = vadd.xlane.f32.xlu0 %v26
    %v28 = vpop.xlane.xlu0 %27
    %v29 = vrcp.pop %v28
    %v30 = vmul.f32 %v28, %v29
    %v31 = vsub.f32 1.0, %v30
    %v32 = vmul.f32 %v29, %v31
    %v33 = vadd.f32 %v29, %v32
    %vm34 = vweird.f32 %v28
    %vm35 = vweird.f32 %v29
    %vm36 = vmor %vm34, %vm35
    %v37 = vsel %vm36, %v29, %v33
    %v38 = vand.u32 2147483647, %v28
    %vm39 = vcmp.eq.f32.partialorder %v38, 8.507059e+37
    %v40 = vand.u32 %v28, 2147483648
    %v41 = vor.u32 1.1754944e-38, %v40
    %v42 = vsel %vm39, %v41, %v37
    %v43 = vmul.f32 %v25, %v42
    %44 = vst.msk [vmem:[#allocation3] sm:$0x1] %vm19, %v43
    // Predicated region
    $region10: #{hw_forward.1} parent=1 // pred_check
      _
    $region11: #{hw_forward.1} parent=1 // pred_check_branch
      %46 = sbr.rel (0) target = $region13
    $region12: #{hw_forward.1} parent=1 // pred_region
      %48 = vsyncadd [#allocation4], 0
      %s50 = sshll.u32 [#allocation3], 4
      %s51 = int_to_ptr.vmem [resolvable:$true] %s50
      %s52 = sshll.u32 %s2, 4
      %s53 = int_to_ptr.hbm [resolvable:$true] %s52
      %55 = dma.vmem_to_hbm [thread:$0]  %s51, 16, %s53, [#allocation4]
    $region13: #{hw_forward.1} parent=1 // pred_fallthru
      _
    // Predicated region
    $region14: #{hw_forward.1} parent=1 // pred_check
      _
    $region15: #{hw_forward.1} parent=1 // pred_check_branch
      %57 = sbr.rel (0) target = $region17
    $region16: #{hw_forward.1} parent=1 // pred_region
      %59 = dma.done [#allocation4], 16
    $region17: #{hw_forward.1} parent=1 // pred_fallthru
      _
    %60 = vsyncpa [#allocation4], 1

</llo_original>
